<compile_context>
chip_gen: v5e
topology: v5e:2x2
jax: 0.10.0
libtpu: 0.0.40
codegen_flags: <defaults>
</compile_context>

<pallas_src>
import functools
import math

import numpy as np

import jax
import jax.numpy as jnp
from jax.experimental import pallas as pl
from jax.experimental.pallas import tpu as pltpu

EPS = 1e-5
_GP = 128          # padded group-column count for the reduce/broadcast matmuls
_MAX_PACK_W = 512  # widest lane packing we are willing to use


def _cdiv(a, b):
    return -(-a // b)


def _ln_plain_kernel(x_ref, w_ref, o_ref):
    """Fallback path: x_ref (T, C), w_ref (1, C), o_ref (T, C). Lane reduce."""
    x = x_ref[...].astype(jnp.float32)
    c = x.shape[-1]
    inv_c = 1.0 / float(c)
    s1 = jnp.sum(x, axis=-1, keepdims=True)
    s2 = jnp.sum(x * x, axis=-1, keepdims=True)
    mean = s1 * inv_c
    var = s2 * inv_c - mean * mean
    inv = jax.lax.rsqrt(var + EPS)
    w = w_ref[...].astype(jnp.float32)          # (1, C) broadcasts over rows
    o_ref[...] = (x * inv * w).astype(o_ref.dtype)


def _ln_packed_kernel(inv_c, x_ref, w_ref, s_ref, b_ref, o_ref):
    """Lane-dense packed path.

    Each W-lane row holds g = W // C logical rows of C features.
      x_ref (T, W) activations, w_ref (1, W) weight tiled g times,
      s_ref (W, 128) 0/1 bf16 reduce matrix (column = group, zero-padded),
      b_ref (128, W) 0/1 bf16 broadcast matrix (= s_ref.T),
      o_ref (T, W) output.
    All per-group sums / broadcasts go through narrow single-pass bf16 MXU
    matmuls; exactness is preserved by splitting f32 operands into bf16 hi+lo.
    """
    x = x_ref[...].astype(jnp.float32)          # (T, W)
    w = w_ref[...].astype(jnp.float32)          # (1, W)
    s_mat = s_ref[...]                          # (W, 128) bf16, {0,1}
    b_mat = b_ref[...]                          # (128, W) bf16, {0,1}

    def dot(a, b):
        return jnp.dot(a, b, preferred_element_type=jnp.float32)

    def split_hi_lo(v):
        hi = v.astype(jnp.bfloat16)
        lo = (v - hi.astype(jnp.float32)).astype(jnp.bfloat16)
        return hi, lo

    x_hi, x_lo = split_hi_lo(x)
    y = x * x
    y_hi, y_lo = split_hi_lo(y)

    s1 = dot(x_hi, s_mat) + dot(x_lo, s_mat)    # (T, 128) per-group sum(x)
    s2 = dot(y_hi, s_mat) + dot(y_lo, s_mat)    # (T, 128) per-group sum(x^2)

    mean = s1 * inv_c
    var = s2 * inv_c - mean * mean
    inv = jax.lax.rsqrt(var + EPS)              # (T, 128); padded cols harmless

    inv_hi, inv_lo = split_hi_lo(inv)
    inv_b = dot(inv_hi, b_mat) + dot(inv_lo, b_mat)   # (T, W) broadcast-back

    o_ref[...] = (x * inv_b * w).astype(o_ref.dtype)


def _choose_tile_rows(n_k, row_bytes, target_bytes):
    """Row tile: multiple of 32, ~target_bytes, >=8 grid steps when rows allow,
    and an even number of steps (v7x shards the parallel axis over 2 TCs)."""
    ALIGN = 32
    n_k = int(n_k)
    if n_k <= ALIGN:
        return n_k
    t = max(ALIGN, (int(target_bytes) // max(int(row_bytes), 1)) // ALIGN * ALIGN)
    cap = _cdiv(_cdiv(n_k, 8), ALIGN) * ALIGN   # keep >= ~8 grid steps
    t = min(t, cap)
    t = max(ALIGN, min(t, n_k))
    steps = _cdiv(n_k, t)
    while steps > 1 and steps % 2 == 1 and t > ALIGN:
        t -= ALIGN
        steps = _cdiv(n_k, t)
    return int(t)


def biasfree_layernorm(x, weight, *, target_block_bytes=None):
    """x: (..., C); weight: (C,). Returns same shape/dtype as x."""
    orig_shape = x.shape
    c = int(orig_shape[-1])
    assert weight.shape == (c,)

    x2 = x.reshape(-1, c)
    n_rows = x2.shape[0]
    itemsize = jnp.dtype(x.dtype).itemsize

    # Generation-aware block / VMEM sizing.
    vmem_cap = 64 << 20
    try:
        vmem_cap = int(pltpu.get_tpu_info().vmem_capacity_bytes)
    except Exception:
        pass
    if vmem_cap >= (96 << 20):                  # v5e / v6e: 128 MiB VMEM per TC
        blk_target, vmem_limit = 4 << 20, 64 << 20
    else:                                       # v7x: 64 MiB VMEM per TC
        blk_target, vmem_limit = 2 << 20, 32 << 20
    if target_block_bytes is not None:
        blk_target = int(target_block_bytes)

    w_pack = c * 128 // math.gcd(c, 128)        # lcm(C, 128)
    use_packed = w_pack <= _MAX_PACK_W          # Restormer C=48/96/192/384 -> 384

    pad_rows = 0
    if use_packed:
        g = w_pack // c
        width = w_pack
        pad_rows = (-n_rows) % g
        xr = x2
        if pad_rows:
            # Only hit when rows % g != 0 (never for stock Restormer spatial
            # sizes); padding a handful of rows beats the lane-sparse path.
            xr = jnp.pad(x2, ((0, pad_rows), (0, 0)))
        n_padded = n_rows + pad_rows
        xk = xr.reshape(n_padded // g, width)          # contiguous: free reshape
        wk = jnp.tile(weight, g).reshape(1, width)     # tiny, one-time

        # Host-built 0/1 reduce / broadcast matrices (bf16-exact), padded to
        # 128 group columns so every matmul dim is layout-friendly.
        lane_grp = np.arange(width) // c
        s_np = np.zeros((width, _GP), np.float32)
        s_np[np.arange(width), lane_grp] = 1.0
        s_mat = jnp.asarray(s_np, jnp.bfloat16)
        b_mat = jnp.asarray(s_np.T, jnp.bfloat16)

        kernel = functools.partial(_ln_packed_kernel, 1.0 / float(c))
        extra_inputs = (s_mat, b_mat)
        extra_specs = [
            pl.BlockSpec((width, _GP), lambda i: (0, 0)),   # VMEM-resident
            pl.BlockSpec((_GP, width), lambda i: (0, 0)),   # VMEM-resident
        ]
    else:
        width = c
        xk = x2
        wk = weight.reshape(1, width)
        kernel = _ln_plain_kernel
        extra_inputs = ()
        extra_specs = []

    n_k = xk.shape[0]
    row_bytes = width * itemsize
    tile_rows = _choose_tile_rows(n_k, row_bytes, blk_target)
    grid = (pl.cdiv(n_k, tile_rows),)

    n_elems = int(n_k) * int(width)
    cost = pl.CostEstimate(
        flops=16 * n_elems,
        transcendentals=int(n_k) * max(1, width // c),
        bytes_accessed=2 * n_elems * itemsize,
    )

    out = pl.pallas_call(
        kernel,
        out_shape=jax.ShapeDtypeStruct((n_k, width), x.dtype),
        grid_spec=pltpu.PrefetchScalarGridSpec(
            num_scalar_prefetch=0,
            grid=grid,
            in_specs=[
                pl.BlockSpec((tile_rows, width), lambda i: (i, 0)),
                pl.BlockSpec((1, width), lambda i: (0, 0)),
            ] + extra_specs,
            out_specs=pl.BlockSpec((tile_rows, width), lambda i: (i, 0)),
        ),
        compiler_params=pltpu.CompilerParams(
            dimension_semantics=("parallel",),
            vmem_limit_bytes=vmem_limit,
        ),
        cost_estimate=cost,
    )(xk, wk, *extra_inputs)

    if use_packed:
        out = out.reshape(-1, c)
        if pad_rows:
            out = out[:n_rows]
    return out.reshape(orig_shape)


if __name__ == "__main__":
    key = jax.random.PRNGKey(0)
    k1, k2, k3, k4, k5 = jax.random.split(key, 5)

    def ref_ln(x, w):
        xf = x.astype(jnp.float32)
        mu = jnp.mean(xf, axis=-1, keepdims=True)
        sigma = jnp.mean((xf - mu) ** 2, axis=-1, keepdims=True)
        return (xf / jnp.sqrt(sigma + EPS) * w).astype(x.dtype)

    # Case 1: Restormer level-1 features after to_3d, C=48 (packed W=384, g=8).
    c1 = 48
    x1 = jax.random.normal(k1, (2, 16 * 16, c1), dtype=jnp.float32)
    w1 = jnp.ones((c1,), dtype=jnp.float32)
    o1 = jax.block_until_ready(biasfree_layernorm(x1, w1))
    assert o1.shape == x1.shape and o1.dtype == x1.dtype
    assert jnp.allclose(o1, ref_ln(x1, w1), atol=2e-4, rtol=2e-4)

    # Case 2: level-2 C=96 (packed g=4), non-trivial weight.
    c2 = 96
    x2 = jax.random.normal(k2, (2, 8 * 8, c2), dtype=jnp.float32)
    w2 = 1.0 + 0.1 * jax.random.normal(k3, (c2,), dtype=jnp.float32)
    o2 = jax.block_until_ready(biasfree_layernorm(x2, w2))
    assert o2.shape == x2.shape and o2.dtype == x2.dtype
    assert jnp.allclose(o2, ref_ln(x2, w2), atol=2e-4, rtol=2e-4)

    # Case 3: row count not divisible by the packing factor (row-pad path).
    c3 = 48
    x3 = jax.random.normal(k4, (1, 196, c3), dtype=jnp.float32)
    w3 = jnp.ones((c3,), dtype=jnp.float32)
    o3 = jax.block_until_ready(biasfree_layernorm(x3, w3))
    assert o3.shape == x3.shape and o3.dtype == x3.dtype
    assert jnp.allclose(o3, ref_ln(x3, w3), atol=2e-4, rtol=2e-4)

    # Case 4: channel count with an impractically wide lcm -> plain fallback.
    c4 = 40
    x4 = jax.random.normal(k5, (2, 64, c4), dtype=jnp.float32)
    w4 = 1.0 + 0.05 * jnp.arange(c4, dtype=jnp.float32)
    o4 = jax.block_until_ready(biasfree_layernorm(x4, w4))
    assert o4.shape == x4.shape and o4.dtype == x4.dtype
    assert jnp.allclose(o4, ref_ln(x4, w4), atol=2e-4, rtol=2e-4)

    print("KERNEL_OK")
</pallas_src>

<mosaic_0001>
module attributes {stable_mosaic.version = 11 : i64} {
  func.func @_ln_packed_kernel(%arg0: i32, %arg1: memref<32x384xf32, #tpu.memory_space<vmem>>, %arg2: memref<1x384xf32, #tpu.memory_space<vmem>>, %arg3: memref<384x128xbf16, #tpu.memory_space<vmem>>, %arg4: memref<128x384xbf16, #tpu.memory_space<vmem>>, %arg5: memref<32x384xf32, #tpu.memory_space<vmem>>) attributes {dimension_semantics = [#tpu.dimension_semantics<parallel>], iteration_bounds = array<i64: 2>, scalar_prefetch = 0 : i64, scratch_operands = 0 : i64, tpu.core_type = #tpu.core_type<tc>, window_params = [{transform_indices = @transform_0, window_bounds = array<i64: 32, 384>}, {pipeline_mode = #tpu.pipeline_mode<synchronous>, transform_indices = @transform_1, window_bounds = array<i64: 1, 384>}, {pipeline_mode = #tpu.pipeline_mode<synchronous>, transform_indices = @transform_2, window_bounds = array<i64: 384, 128>}, {pipeline_mode = #tpu.pipeline_mode<synchronous>, transform_indices = @transform_3, window_bounds = array<i64: 128, 384>}, {transform_indices = @transform_4, window_bounds = array<i64: 32, 384>}]} {
    %c0 = arith.constant 0 : index
    %c0_0 = arith.constant 0 : index
    %0 = vector.load %arg1[%c0, %c0_0] : memref<32x384xf32, #tpu.memory_space<vmem>>, vector<32x384xf32>
    %c0_1 = arith.constant 0 : index
    %c0_2 = arith.constant 0 : index
    %1 = vector.load %arg2[%c0_1, %c0_2] : memref<1x384xf32, #tpu.memory_space<vmem>>, vector<1x384xf32>
    %c0_3 = arith.constant 0 : index
    %c0_4 = arith.constant 0 : index
    %2 = vector.load %arg3[%c0_3, %c0_4] : memref<384x128xbf16, #tpu.memory_space<vmem>>, vector<384x128xbf16>
    %c0_5 = arith.constant 0 : index
    %c0_6 = arith.constant 0 : index
    %3 = vector.load %arg4[%c0_5, %c0_6] : memref<128x384xbf16, #tpu.memory_space<vmem>>, vector<128x384xbf16>
    %4 = arith.truncf %0 : vector<32x384xf32> to vector<32x384xbf16>
    %5 = arith.extf %4 : vector<32x384xbf16> to vector<32x384xf32>
    %6 = arith.subf %0, %5 : vector<32x384xf32>
    %7 = arith.truncf %6 : vector<32x384xf32> to vector<32x384xbf16>
    %8 = arith.mulf %0, %0 : vector<32x384xf32>
    %9 = arith.truncf %8 : vector<32x384xf32> to vector<32x384xbf16>
    %10 = arith.extf %9 : vector<32x384xbf16> to vector<32x384xf32>
    %11 = arith.subf %8, %10 : vector<32x384xf32>
    %12 = arith.truncf %11 : vector<32x384xf32> to vector<32x384xbf16>
    %cst = arith.constant dense<0.000000e+00> : vector<32x128xf32>
    %13 = tpu.matmul %4, %2, %cst {dimension_numbers = #tpu.dot_dimension_numbers<[1], [0], [0], [1], [0, 0, 1, 1], [], []>} : vector<32x384xbf16>, vector<384x128xbf16>, vector<32x128xf32> -> vector<32x128xf32>
    %cst_7 = arith.constant dense<0.000000e+00> : vector<32x128xf32>
    %14 = tpu.matmul %7, %2, %cst_7 {dimension_numbers = #tpu.dot_dimension_numbers<[1], [0], [0], [1], [0, 0, 1, 1], [], []>} : vector<32x384xbf16>, vector<384x128xbf16>, vector<32x128xf32> -> vector<32x128xf32>
    %15 = arith.addf %13, %14 : vector<32x128xf32>
    %cst_8 = arith.constant dense<0.000000e+00> : vector<32x128xf32>
    %16 = tpu.matmul %9, %2, %cst_8 {dimension_numbers = #tpu.dot_dimension_numbers<[1], [0], [0], [1], [0, 0, 1, 1], [], []>} : vector<32x384xbf16>, vector<384x128xbf16>, vector<32x128xf32> -> vector<32x128xf32>
    %cst_9 = arith.constant dense<0.000000e+00> : vector<32x128xf32>
    %17 = tpu.matmul %12, %2, %cst_9 {dimension_numbers = #tpu.dot_dimension_numbers<[1], [0], [0], [1], [0, 0, 1, 1], [], []>} : vector<32x384xbf16>, vector<384x128xbf16>, vector<32x128xf32> -> vector<32x128xf32>
    %18 = arith.addf %16, %17 : vector<32x128xf32>
    %cst_10 = arith.constant 0.020833334 : f32
    %19 = vector.broadcast %cst_10 : f32 to vector<32x128xf32>
    %20 = arith.mulf %15, %19 : vector<32x128xf32>
    %cst_11 = arith.constant 0.020833334 : f32
    %21 = vector.broadcast %cst_11 : f32 to vector<32x128xf32>
    %22 = arith.mulf %18, %21 : vector<32x128xf32>
    %23 = arith.mulf %20, %20 : vector<32x128xf32>
    %24 = arith.subf %22, %23 : vector<32x128xf32>
    %cst_12 = arith.constant 9.99999974E-6 : f32
    %25 = vector.broadcast %cst_12 : f32 to vector<32x128xf32>
    %26 = arith.addf %24, %25 : vector<32x128xf32>
    %27 = math.rsqrt %26 : vector<32x128xf32>
    %28 = arith.truncf %27 : vector<32x128xf32> to vector<32x128xbf16>
    %29 = arith.extf %28 : vector<32x128xbf16> to vector<32x128xf32>
    %30 = arith.subf %27, %29 : vector<32x128xf32>
    %31 = arith.truncf %30 : vector<32x128xf32> to vector<32x128xbf16>
    %cst_13 = arith.constant dense<0.000000e+00> : vector<32x384xf32>
    %32 = tpu.matmul %28, %3, %cst_13 {dimension_numbers = #tpu.dot_dimension_numbers<[1], [0], [0], [1], [0, 0, 1, 1], [], []>} : vector<32x128xbf16>, vector<128x384xbf16>, vector<32x384xf32> -> vector<32x384xf32>
    %cst_14 = arith.constant dense<0.000000e+00> : vector<32x384xf32>
    %33 = tpu.matmul %31, %3, %cst_14 {dimension_numbers = #tpu.dot_dimension_numbers<[1], [0], [0], [1], [0, 0, 1, 1], [], []>} : vector<32x128xbf16>, vector<128x384xbf16>, vector<32x384xf32> -> vector<32x384xf32>
    %34 = arith.addf %32, %33 : vector<32x384xf32>
    %35 = arith.mulf %0, %34 : vector<32x384xf32>
    %36 = vector.broadcast %1 : vector<1x384xf32> to vector<32x384xf32>
    %37 = arith.mulf %35, %36 : vector<32x384xf32>
    %c0_15 = arith.constant 0 : index
    %c0_16 = arith.constant 0 : index
    %38 = vector.load %arg5[%c0_15, %c0_16] : memref<32x384xf32, #tpu.memory_space<vmem>>, vector<32x384xf32>
    tpu.vector_store %arg5[%c0_15, %c0_16], %37 {strides = array<i32>} : memref<32x384xf32, #tpu.memory_space<vmem>>, vector<32x384xf32>,
    return
  }
  func.func @transform_0(%arg0: i32) -> (i32, i32) {
    %c0_i32 = arith.constant 0 : i32
    %c0_i32_0 = arith.constant 0 : i32
    return %arg0, %c0_i32 : i32, i32
  }
  func.func @transform_1(%arg0: i32) -> (i32, i32) {
    %c0_i32 = arith.constant 0 : i32
    %c0_i32_0 = arith.constant 0 : i32
    %c0_i32_1 = arith.constant 0 : i32
    return %c0_i32, %c0_i32_0 : i32, i32
  }
  func.func @transform_2(%arg0: i32) -> (i32, i32) {
    %c0_i32 = arith.constant 0 : i32
    %c0_i32_0 = arith.constant 0 : i32
    %c0_i32_1 = arith.constant 0 : i32
    return %c0_i32, %c0_i32_0 : i32, i32
  }
  func.func @transform_3(%arg0: i32) -> (i32, i32) {
    %c0_i32 = arith.constant 0 : i32
    %c0_i32_0 = arith.constant 0 : i32
    %c0_i32_1 = arith.constant 0 : i32
    return %c0_i32, %c0_i32_0 : i32, i32
  }
  func.func @transform_4(%arg0: i32) -> (i32, i32) {
    %c0_i32 = arith.constant 0 : i32
    %c0_i32_0 = arith.constant 0 : i32
    return %arg0, %c0_i32 : i32, i32
  }
}

</mosaic_0001>

<llo_original>
// kernel: tpu_custom_call.1
$region0: #{tpu_custom_call.1}
  #allocation0 [shape = 'u32[]', space=smem, size = 0x4, offset = 0x4, fixed_abs, tag = 'smem constant byte address 0x4 - core index']
  #allocation1 [shape = 'u32[72,128]{1,0:T(1,128)}', space=vmem, size = 0x9000, scoped, tag = 'internal scratch']
  %s0 = inlined_call_operand.hbm [shape: f32[64,384], index: 0, kind: input, shape index: {}]
  %s1 = inlined_call_operand.hbm [shape: f32[1,384], index: 1, kind: input, shape index: {}]
  %s2 = inlined_call_operand.hbm [shape: bf16[384,128], index: 2, kind: input, shape index: {}]
  %s3 = inlined_call_operand.hbm [shape: bf16[128,384], index: 3, kind: input, shape index: {}]
  %s4 = inlined_call_operand.hbm [shape: f32[64,384], index: 4, kind: output, shape index: {}]
  %s5 = sld [smem:[#allocation0]]
  $region65: #{tpu_custom_call.1} parent=0
    _
  %s7 = ssub.s32 1, %s5
  %s8 = scalar_select 0, %s7, %s5
  $region1: #{tpu_custom_call.1} parent=0
    #allocation2 [shape = 'u8[98304]{0}', space=vmem, size = 0x18000, scoped, tag = 'input window, operand 0']
    #allocation3 [shape = 's32[2]{0}', space=sflag, size = 0x8, scoped, tag = 'scoped memory for tpu_custom_call.1']
    #allocation4 [shape = 's32[2]{0}', space=sflag, size = 0x8, scoped, tag = 'scoped memory for tpu_custom_call.1']
    #allocation5 [shape = 'u8[1536]{0}', space=vmem, size = 0x800, scoped, tag = 'input window, operand 1, single buffered']
    #allocation6 [shape = 's32[1]{0}', space=sflag, size = 0x4, scoped, tag = 'scoped memory for tpu_custom_call.1']
    #allocation7 [shape = 'u8[98304]{0}', space=vmem, size = 0x18000, scoped, tag = 'input window, operand 2, single buffered']
    #allocation8 [shape = 'u8[98304]{0}', space=vmem, size = 0x18000, scoped, tag = 'input window, operand 3, single buffered']
    #allocation9 [shape = 's32[1]{0}', space=sflag, size = 0x4, scoped, tag = 'scoped memory for tpu_custom_call.1']
    #allocation10 [shape = 'u8[98304]{0}', space=vmem, size = 0x18000, scoped, tag = 'output window, operand 0']
    %9 = vsyncpa [#allocation3], 0
    %s10 = scalar_lea.sflag [#allocation3], 1
    %11 = vsyncpa %s10, 0
    %12 = vsyncpa [#allocation6], 0
    %13 = vsyncpa [#allocation9], 0
    %14 = vsyncpa [#allocation4], 0
    %s15 = scalar_lea.sflag [#allocation4], 1
    %16 = vsyncpa %s15, 0
    loop: start=0, step=1, limit=4
    $region2: #{tpu_custom_call.1} parent=1 // loop_pre_header
      _
    $region3: #{tpu_custom_call.1} parent=1 // loop_header
      %s18 = sphi 0, %s22
      %p19 = scmp.ge.s32.totalorder %s18, 4
      %s28 = sphi 0, %s30
      %s31 = sphi 0, %s28
      %s32 = sphi 0, %s31
      %s48 = sphi 0, %s32
      %s52 = sphi 0, %s52
      %s54 = sphi 0, %s52
      %s55 = sphi 0, %s54
      %s69 = sphi 0, %s55
      %s73 = sphi 0, %s73
      %s75 = sphi 0, %s73
      %s76 = sphi 0, %s75
      %s90 = sphi 0, %s76
      %s94 = sphi 0, %s94
      %s96 = sphi 0, %s94
      %s97 = sphi 0, %s96
      %s111 = sphi 0, %s97
      %s117 = sphi 0, %s119
      %s120 = sphi 0, %s117
      %s121 = sphi 0, %s120
      %s137 = sphi 0, %s121
    $region4: #{tpu_custom_call.1} parent=1 // loop_header_branch
      %21 = sbr.rel (%p19) target = $region8
    $region5: #{tpu_custom_call.1} parent=1 // loop_body
      %s23 = ssub.s32 %s18, 1
      %s24 = ssub.s32 %s18, 2
      %s25 = sadd.s32 %s18, 1
      %s26 = ssub.s32 %s18, %s25
      %p27 = scmp.eq.s32.totalorder %s26, 0
      %s29 = sadd.s32 %s28, 1
      %s30 = scalar_select %p27, %s28, %s29
      %p33 = pneg %p27
      %p34 = scmp.eq.s32.totalorder %s18, 1
      %p35 = por %p33, %p34
      %p36 = scmp.ne.s32.totalorder %s28, %s31
      %p37 = scmp.eq.s32.totalorder %s18, 0
      %p38 = por %p36, %p37
      %p39 = scmp.ne.s32.totalorder %s28, %s31
      %p40 = scmp.eq.s32.totalorder %s23, 1
      %p41 = por %p39, %p40
      %p42 = scmp.ne.s32.totalorder %s31, %s32
      %p43 = scmp.eq.s32.totalorder %s23, 0
      %p44 = por %p42, %p43
      %p45 = scmp.ne.s32.totalorder %s31, %s32
      %p46 = scmp.eq.s32.totalorder %s24, 1
      %p47 = por %p45, %p46
      %p49 = scmp.ne.s32.totalorder %s32, %s48
      %p50 = scmp.eq.s32.totalorder %s24, 0
      %p51 = por %p49, %p50
      %s53 = sadd.s32 %s52, 1
      %p56 = scmp.eq.s32.totalorder %s18, 1
      %p57 = scmp.ne.s32.totalorder %s52, %s54
      %p58 = scmp.eq.s32.totalorder %s18, 0
      %p59 = por %p57, %p58
      %p60 = scmp.ne.s32.totalorder %s52, %s54
      %p61 = scmp.eq.s32.totalorder %s23, 1
      %p62 = por %p60, %p61
      %p63 = scmp.ne.s32.totalorder %s54, %s55
      %p64 = scmp.eq.s32.totalorder %s23, 0
      %p65 = por %p63, %p64
      %p66 = scmp.ne.s32.totalorder %s54, %s55
      %p67 = scmp.eq.s32.totalorder %s24, 1
      %p68 = por %p66, %p67
      %p70 = scmp.ne.s32.totalorder %s55, %s69
      %p71 = scmp.eq.s32.totalorder %s24, 0
      %p72 = por %p70, %p71
      %s74 = sadd.s32 %s73, 1
      %p77 = scmp.eq.s32.totalorder %s18, 1
      %p78 = scmp.ne.s32.totalorder %s73, %s75
      %p79 = scmp.eq.s32.totalorder %s18, 0
      %p80 = por %p78, %p79
      %p81 = scmp.ne.s32.totalorder %s73, %s75
      %p82 = scmp.eq.s32.totalorder %s23, 1
      %p83 = por %p81, %p82
      %p84 = scmp.ne.s32.totalorder %s75, %s76
      %p85 = scmp.eq.s32.totalorder %s23, 0
      %p86 = por %p84, %p85
      %p87 = scmp.ne.s32.totalorder %s75, %s76
      %p88 = scmp.eq.s32.totalorder %s24, 1
      %p89 = por %p87, %p88
      %p91 = scmp.ne.s32.totalorder %s76, %s90
      %p92 = scmp.eq.s32.totalorder %s24, 0
      %p93 = por %p91, %p92
      %s95 = sadd.s32 %s94, 1
      %p98 = scmp.eq.s32.totalorder %s18, 1
      %p99 = scmp.ne.s32.totalorder %s94, %s96
      %p100 = scmp.eq.s32.totalorder %s18, 0
      %p101 = por %p99, %p100
      %p102 = scmp.ne.s32.totalorder %s94, %s96
      %p103 = scmp.eq.s32.totalorder %s23, 1
      %p104 = por %p102, %p103
      %p105 = scmp.ne.s32.totalorder %s96, %s97
      %p106 = scmp.eq.s32.totalorder %s23, 0
      %p107 = por %p105, %p106
      %p108 = scmp.ne.s32.totalorder %s96, %s97
      %p109 = scmp.eq.s32.totalorder %s24, 1
      %p110 = por %p108, %p109
      %p112 = scmp.ne.s32.totalorder %s97, %s111
      %p113 = scmp.eq.s32.totalorder %s24, 0
      %p114 = por %p112, %p113
      %s115 = ssub.s32 %s18, %s25
      %p116 = scmp.eq.s32.totalorder %s115, 0
      %s118 = sadd.s32 %s117, 1
      %s119 = scalar_select %p116, %s117, %s118
      %p122 = pneg %p116
      %p123 = scmp.eq.s32.totalorder %s18, 1
      %p124 = por %p122, %p123
      %p125 = scmp.ne.s32.totalorder %s117, %s120
      %p126 = scmp.eq.s32.totalorder %s18, 0
      %p127 = por %p125, %p126
      %p128 = scmp.ne.s32.totalorder %s117, %s120
      %p129 = scmp.eq.s32.totalorder %s23, 1
      %p130 = por %p128, %p129
      %p131 = scmp.ne.s32.totalorder %s120, %s121
      %p132 = scmp.eq.s32.totalorder %s23, 0
      %p133 = por %p131, %p132
      %p134 = scmp.ne.s32.totalorder %s120, %s121
      %p135 = scmp.eq.s32.totalorder %s24, 1
      %p136 = por %p134, %p135
      %p138 = scmp.ne.s32.totalorder %s121, %s137
      %p139 = scmp.eq.s32.totalorder %s24, 0
      %p140 = por %p138, %p139
      %p141 = scmp.le.s32.totalorder 1, %s18
      %p142 = scmp.lt.s32.totalorder %s18, 3
      %p143 = pnand %p141, %p142
      %p144 = pneg %p143
      // Predicated region
      $region9: #{tpu_custom_call.1} parent=5 // pred_check
        _
      $region10: #{tpu_custom_call.1} parent=5 // pred_check_branch
        %146 = sbr.rel (%p143) target = $region12
      $region11: #{tpu_custom_call.1} parent=5 // pred_region
        %s147 = ssub.s32 %s18, 1
        // Predicated region
        $region13: #{tpu_custom_call.1} parent=11 // pred_check
          %p148 = pneg %p65
        $region14: #{tpu_custom_call.1} parent=11 // pred_check_branch
          %150 = sbr.rel (%p148) target = $region16
        $region15: #{tpu_custom_call.1} parent=11 // pred_region
          %152 = vsyncadd [#allocation6], 0
          %s154 = sshll.u32 %s1, 4
          %s155 = int_to_ptr.hbm [resolvable:$true] %s154
          %s156 = sshll.u32 [#allocation5], 4
          %s157 = int_to_ptr.vmem [resolvable:$true] %s156
          %159 = dma.hbm_to_vmem [thread:$0]  %s155, 48, %s157, [#allocation6]
        $region16: #{tpu_custom_call.1} parent=11 // pred_fallthru
          _
        // Predicated region
        $region17: #{tpu_custom_call.1} parent=11 // pred_check
          %p160 = pneg %p86
        $region18: #{tpu_custom_call.1} parent=11 // pred_check_branch
          %162 = sbr.rel (%p160) target = $region20
        $region19: #{tpu_custom_call.1} parent=11 // pred_region
          %164 = vsyncadd [#allocation6], 0
          %s165 = sshll.u32 %s2, 4
          %s166 = int_to_ptr.hbm [resolvable:$true] %s165
          %s167 = sshll.u32 [#allocation7], 4
          %s168 = int_to_ptr.vmem [resolvable:$true] %s167
          %173 = dma.hbm_to_vmem [thread:$0]  %s166, 3072, %s168, [#allocation6], 64, 64, 4
        $region20: #{tpu_custom_call.1} parent=11 // pred_fallthru
          _
        // Predicated region
        $region21: #{tpu_custom_call.1} parent=11 // pred_check
          %p174 = pneg %p107
        $region22: #{tpu_custom_call.1} parent=11 // pred_check_branch
          %176 = sbr.rel (%p174) target = $region24
        $region23: #{tpu_custom_call.1} parent=11 // pred_region
          %178 = vsyncadd [#allocation9], 0
          %s179 = sshll.u32 %s3, 4
          %s180 = int_to_ptr.hbm [resolvable:$true] %s179
          %s181 = sshll.u32 [#allocation8], 4
          %s182 = int_to_ptr.vmem [resolvable:$true] %s181
          %187 = dma.hbm_to_vmem [thread:$0]  %s180, 3072, %s182, [#allocation9], 192, 192, 12
        $region24: #{tpu_custom_call.1} parent=11 // pred_fallthru
          _
      $region12: #{tpu_custom_call.1} parent=5 // pred_fallthru
        _
      %p188 = scmp.lt.s32.totalorder %s18, 2
      // Predicated region
      $region25: #{tpu_custom_call.1} parent=5 // pred_check
        %p189 = pneg %p188
      $region26: #{tpu_custom_call.1} parent=5 // pred_check_branch
        %191 = sbr.rel (%p189) target = $region28
      $region27: #{tpu_custom_call.1} parent=5 // pred_region
        // Predicated region
        $region29: #{tpu_custom_call.1} parent=27 // pred_check
          %p192 = pneg %p38
        $region30: #{tpu_custom_call.1} parent=27 // pred_check_branch
          %194 = sbr.rel (%p192) target = $region32
        $region31: #{tpu_custom_call.1} parent=27 // pred_region
          %s195 = sand.u32 %s28, 1
          %s196 = scalar_lea.sflag [#allocation3], %s195
          %s197 = sand.u32 %s28, 1
          %s198 = smul.addr %s197, 96
          %s199 = scalar_lea.vmem [#allocation2], %s198
          %s200 = smul.u32 4, %s18
          %202 = vsyncadd %s196, 0
          %s203 = smul.addr %s200, 3
          %s204 = smul.addr %s203, 8
          %s205 = scalar_lea.hbm %s0, %s204
          %s206 = sshll.u32 %s205, 4
          %s207 = int_to_ptr.hbm [resolvable:$true] %s206
          %s208 = sshll.u32 %s199, 4
          %s209 = int_to_ptr.vmem [resolvable:$true] %s208
          %214 = dma.hbm_to_vmem [thread:$0]  %s207, 1536, %s209, %s196, 384, 384, 24
        $region32: #{tpu_custom_call.1} parent=27 // pred_fallthru
          _
      $region28: #{tpu_custom_call.1} parent=5 // pred_fallthru
        _
      %p215 = scmp.le.s32.totalorder 1, %s18
      %p216 = scmp.lt.s32.totalorder %s18, 3
      %p217 = pnand %p215, %p216
      %p218 = pneg %p217
      // Predicated region
      $region33: #{tpu_custom_call.1} parent=5 // pred_check
        _
      $region34: #{tpu_custom_call.1} parent=5 // pred_check_branch
        %220 = sbr.rel (%p217) target = $region36
      $region35: #{tpu_custom_call.1} parent=5 // pred_region
        %s221 = ssub.s32 %s18, 1
        %s222 = sand.u32 %s31, 1
        %s223 = scalar_lea.sflag [#allocation3], %s222
        %s224 = sand.u32 %s31, 1
        %s225 = smul.addr %s224, 96
        %s226 = scalar_lea.vmem [#allocation2], %s225
        // Predicated region
        $region37: #{tpu_custom_call.1} parent=35 // pred_check
          %p227 = pneg %p44
        $region38: #{tpu_custom_call.1} parent=35 // pred_check_branch
          %229 = sbr.rel (%p227) target = $region40
        $region39: #{tpu_custom_call.1} parent=35 // pred_region
          %231 = dma.done %s223, 1536
        $region40: #{tpu_custom_call.1} parent=35 // pred_fallthru
          _
        // Predicated region
        $region41: #{tpu_custom_call.1} parent=35 // pred_check
          %p232 = pneg %p65
        $region42: #{tpu_custom_call.1} parent=35 // pred_check_branch
          %234 = sbr.rel (%p232) target = $region44
        $region43: #{tpu_custom_call.1} parent=35 // pred_region
          %236 = dma.done [#allocation6], 48
        $region44: #{tpu_custom_call.1} parent=35 // pred_fallthru
          _
        // Predicated region
        $region45: #{tpu_custom_call.1} parent=35 // pred_check
          %p237 = pneg %p86
        $region46: #{tpu_custom_call.1} parent=35 // pred_check_branch
          %239 = sbr.rel (%p237) target = $region48
        $region47: #{tpu_custom_call.1} parent=35 // pred_region
          %241 = dma.done [#allocation6], 3072
        $region48: #{tpu_custom_call.1} parent=35 // pred_fallthru
          _
        // Predicated region
        $region49: #{tpu_custom_call.1} parent=35 // pred_check
          %p242 = pneg %p107
        $region50: #{tpu_custom_call.1} parent=35 // pred_check_branch
          %244 = sbr.rel (%p242) target = $region52
        $region51: #{tpu_custom_call.1} parent=35 // pred_region
          %246 = dma.done [#allocation9], 3072
        $region52: #{tpu_custom_call.1} parent=35 // pred_fallthru
          _
        %s247 = sand.u32 %s31, 1
        %s248 = scalar_lea.sflag [#allocation3], %s247
        %s249 = sand.u32 %s31, 1
        %s250 = smul.addr %s249, 96
        %s251 = scalar_lea.vmem [#allocation2], %s250
        %p252 = pneg %p44
        %p253 = pneg %p41
        %p254 = pneg %p65
        %p255 = pneg %p62
        %p256 = pneg %p86
        %p257 = pneg %p83
        %p258 = pneg %p107
        %p259 = pneg %p104
        %p260 = pneg %p133
        %p261 = pneg %p130
        %s262 = sand.u32 %s120, 1
        %s263 = scalar_lea.sflag [#allocation4], %s262
        %s264 = sand.u32 %s120, 1
        %s265 = smul.addr %s264, 96
        %s266 = scalar_lea.vmem [#allocation10], %s265
        %s267 = smul.u32 4, %s23
        %s268 = smul.u32 4, %s23
        %v269 = vld [vmem:[%s226] sm:$0xff]
        %v270 = vld [vmem:[%s226 + $0x8] sm:$0xff]
        %v271 = vld [vmem:[%s226 + $0x10] sm:$0xff]
        %v272 = vld [vmem:[%s226 + $0x18] sm:$0xff]
        %v273 = vld [vmem:[%s226 + $0x20] sm:$0xff]
        %v274 = vld [vmem:[%s226 + $0x28] sm:$0xff]
        %v275 = vld [vmem:[%s226 + $0x30] sm:$0xff]
        %v276 = vld [vmem:[%s226 + $0x38] sm:$0xff]
        %v277 = vld [vmem:[%s226 + $0x40] sm:$0xff]
        %v278 = vld [vmem:[%s226 + $0x48] sm:$0xff]
        %v279 = vld [vmem:[%s226 + $0x50] sm:$0xff]
        %v280 = vld [vmem:[%s226 + $0x58] sm:$0xff]
        %v281 = vld [vmem:[#allocation5] sm:$0x7]
        %v282 = vld [vmem:[#allocation7] sm:$0xf]
        %v283 = vld [vmem:[#allocation7 + $0x4] sm:$0xf]
        %v284 = vld [vmem:[#allocation7 + $0x8] sm:$0xf]
        %v285 = vld [vmem:[#allocation7 + $0xc] sm:$0xf]
        %v286 = vld [vmem:[#allocation7 + $0x10] sm:$0xf]
        %v287 = vld [vmem:[#allocation7 + $0x14] sm:$0xf]
        %v288 = vld [vmem:[#allocation7 + $0x18] sm:$0xf]
        %v289 = vld [vmem:[#allocation7 + $0x1c] sm:$0xf]
        %v290 = vld [vmem:[#allocation7 + $0x20] sm:$0xf]
        %v291 = vld [vmem:[#allocation7 + $0x24] sm:$0xf]
        %v292 = vld [vmem:[#allocation7 + $0x28] sm:$0xf]
        %v293 = vld [vmem:[#allocation7 + $0x2c] sm:$0xf]
        %v294 = vld [vmem:[#allocation7 + $0x30] sm:$0xf]
        %v295 = vld [vmem:[#allocation7 + $0x34] sm:$0xf]
        %v296 = vld [vmem:[#allocation7 + $0x38] sm:$0xf]
        %v297 = vld [vmem:[#allocation7 + $0x3c] sm:$0xf]
        %v298 = vld [vmem:[#allocation7 + $0x40] sm:$0xf]
        %v299 = vld [vmem:[#allocation7 + $0x44] sm:$0xf]
        %v300 = vld [vmem:[#allocation7 + $0x48] sm:$0xf]
        %v301 = vld [vmem:[#allocation7 + $0x4c] sm:$0xf]
        %v302 = vld [vmem:[#allocation7 + $0x50] sm:$0xf]
        %v303 = vld [vmem:[#allocation7 + $0x54] sm:$0xf]
        %v304 = vld [vmem:[#allocation7 + $0x58] sm:$0xf]
        %v305 = vld [vmem:[#allocation7 + $0x5c] sm:$0xf]
        %v306 = vld [vmem:[#allocation7 + $0x60] sm:$0xf]
        %v307 = vld [vmem:[#allocation7 + $0x64] sm:$0xf]
        %v308 = vld [vmem:[#allocation7 + $0x68] sm:$0xf]
        %v309 = vld [vmem:[#allocation7 + $0x6c] sm:$0xf]
        %v310 = vld [vmem:[#allocation7 + $0x70] sm:$0xf]
        %v311 = vld [vmem:[#allocation7 + $0x74] sm:$0xf]
        %v312 = vld [vmem:[#allocation7 + $0x78] sm:$0xf]
        %v313 = vld [vmem:[#allocation7 + $0x7c] sm:$0xf]
        %v314 = vld [vmem:[#allocation7 + $0x80] sm:$0xf]
        %v315 = vld [vmem:[#allocation7 + $0x84] sm:$0xf]
        %v316 = vld [vmem:[#allocation7 + $0x88] sm:$0xf]
        %v317 = vld [vmem:[#allocation7 + $0x8c] sm:$0xf]
        %v318 = vld [vmem:[#allocation7 + $0x90] sm:$0xf]
        %v319 = vld [vmem:[#allocation7 + $0x94] sm:$0xf]
        %v320 = vld [vmem:[#allocation7 + $0x98] sm:$0xf]
        %v321 = vld [vmem:[#allocation7 + $0x9c] sm:$0xf]
        %v322 = vld [vmem:[#allocation7 + $0xa0] sm:$0xf]
        %v323 = vld [vmem:[#allocation7 + $0xa4] sm:$0xf]
        %v324 = vld [vmem:[#allocation7 + $0xa8] sm:$0xf]
        %v325 = vld [vmem:[#allocation7 + $0xac] sm:$0xf]
        %v326 = vld [vmem:[#allocation7 + $0xb0] sm:$0xf]
        %v327 = vld [vmem:[#allocation7 + $0xb4] sm:$0xf]
        %v328 = vld [vmem:[#allocation7 + $0xb8] sm:$0xf]
        %v329 = vld [vmem:[#allocation7 + $0xbc] sm:$0xf]
        %v330 = vld [vmem:[#allocation8] sm:$0xff]
        %v331 = vld [vmem:[#allocation8 + $0x8] sm:$0xf]
        %v332 = vld [vmem:[#allocation8 + $0xc] sm:$0xff]
        %v333 = vld [vmem:[#allocation8 + $0x14] sm:$0xf]
        %v334 = vld [vmem:[#allocation8 + $0x18] sm:$0xff]
        %v335 = vld [vmem:[#allocation8 + $0x20] sm:$0xf]
        %v336 = vld [vmem:[#allocation8 + $0x24] sm:$0xff]
        %v337 = vld [vmem:[#allocation8 + $0x2c] sm:$0xf]
        %v338 = vld [vmem:[#allocation8 + $0x30] sm:$0xff]
        %v339 = vld [vmem:[#allocation8 + $0x38] sm:$0xf]
        %v340 = vld [vmem:[#allocation8 + $0x3c] sm:$0xff]
        %v341 = vld [vmem:[#allocation8 + $0x44] sm:$0xf]
        %v342 = vld [vmem:[#allocation8 + $0x48] sm:$0xff]
        %v343 = vld [vmem:[#allocation8 + $0x50] sm:$0xf]
        %v344 = vld [vmem:[#allocation8 + $0x54] sm:$0xff]
        %v345 = vld [vmem:[#allocation8 + $0x5c] sm:$0xf]
        %v346 = vld [vmem:[#allocation8 + $0x60] sm:$0xff]
        %v347 = vld [vmem:[#allocation8 + $0x68] sm:$0xf]
        %v348 = vld [vmem:[#allocation8 + $0x6c] sm:$0xff]
        %v349 = vld [vmem:[#allocation8 + $0x74] sm:$0xf]
        %v350 = vld [vmem:[#allocation8 + $0x78] sm:$0xff]
        %v351 = vld [vmem:[#allocation8 + $0x80] sm:$0xf]
        %v352 = vld [vmem:[#allocation8 + $0x84] sm:$0xff]
        %v353 = vld [vmem:[#allocation8 + $0x8c] sm:$0xf]
        %v354 = vld [vmem:[#allocation8 + $0x90] sm:$0xff]
        %v355 = vld [vmem:[#allocation8 + $0x98] sm:$0xf]
        %v356 = vld [vmem:[#allocation8 + $0x9c] sm:$0xff]
        %v357 = vld [vmem:[#allocation8 + $0xa4] sm:$0xf]
        %v358 = vld [vmem:[#allocation8 + $0xa8] sm:$0xff]
        %v359 = vld [vmem:[#allocation8 + $0xb0] sm:$0xf]
        %v360 = vld [vmem:[#allocation8 + $0xb4] sm:$0xff]
        %v361 = vld [vmem:[#allocation8 + $0xbc] sm:$0xf]
        %v362 = vpack.c.bf16 %v270, %v269
        %v363 = vpack.c.bf16 %v271, %v271
        %v364 = vpack.c.bf16 %v273, %v272
        %v365 = vpack.c.bf16 %v274, %v274
        %v366 = vpack.c.bf16 %v276, %v275
        %v367 = vpack.c.bf16 %v277, %v277
        %v368 = vpack.c.bf16 %v279, %v278
        %v369 = vpack.c.bf16 %v280, %v280
        %v370 = vunpack.c.l.bf16 %v362
        %v371 = vunpack.c.h.bf16 %v362
        %v372 = vunpack.c.l.bf16 %v363
        %v373 = vunpack.c.l.bf16 %v364
        %v374 = vunpack.c.h.bf16 %v364
        %v375 = vunpack.c.l.bf16 %v365
        %v376 = vunpack.c.l.bf16 %v366
        %v377 = vunpack.c.h.bf16 %v366
        %v378 = vunpack.c.l.bf16 %v367
        %v379 = vunpack.c.l.bf16 %v368
        %v380 = vunpack.c.h.bf16 %v368
        %v381 = vunpack.c.l.bf16 %v369
        %v382 = vsub.f32 %v269, %v370
        %v383 = vsub.f32 %v270, %v371
        %v384 = vsub.f32 %v271, %v372
        %v385 = vsub.f32 %v272, %v373
        %v386 = vsub.f32 %v273, %v374
        %v387 = vsub.f32 %v274, %v375
        %v388 = vsub.f32 %v275, %v376
        %v389 = vsub.f32 %v276, %v377
        %v390 = vsub.f32 %v277, %v378
        %v391 = vsub.f32 %v278, %v379
        %v392 = vsub.f32 %v279, %v380
        %v393 = vsub.f32 %v280, %v381
        %v394 = vpack.c.bf16 %v385, %v382
        %v395 = vpack.c.bf16 %v386, %v383
        %v396 = vpack.c.bf16 %v387, %v384
        %v397 = vpack.c.bf16 %v391, %v388
        %v398 = vpack.c.bf16 %v392, %v389
        %v399 = vpack.c.bf16 %v393, %v390
        %v400 = vmul.f32 %v269, %v269
        %v401 = vmul.f32 %v270, %v270
        %v402 = vmul.f32 %v271, %v271
        %v403 = vmul.f32 %v272, %v272
        %v404 = vmul.f32 %v273, %v273
        %v405 = vmul.f32 %v274, %v274
        %v406 = vmul.f32 %v275, %v275
        %v407 = vmul.f32 %v276, %v276
        %v408 = vmul.f32 %v277, %v277
        %v409 = vmul.f32 %v278, %v278
        %v410 = vmul.f32 %v279, %v279
        %v411 = vmul.f32 %v280, %v280
        %v412 = vpack.c.bf16 %v401, %v400
        %v413 = vpack.c.bf16 %v402, %v402
        %v414 = vpack.c.bf16 %v404, %v403
        %v415 = vpack.c.bf16 %v405, %v405
        %v416 = vpack.c.bf16 %v407, %v406
        %v417 = vpack.c.bf16 %v408, %v408
        %v418 = vpack.c.bf16 %v410, %v409
        %v419 = vpack.c.bf16 %v411, %v411
        %v420 = vunpack.c.l.bf16 %v412
        %v421 = vunpack.c.h.bf16 %v412
        %v422 = vunpack.c.l.bf16 %v413
        %v423 = vunpack.c.l.bf16 %v414
        %v424 = vunpack.c.h.bf16 %v414
        %v425 = vunpack.c.l.bf16 %v415
        %v426 = vunpack.c.l.bf16 %v416
        %v427 = vunpack.c.h.bf16 %v416
        %v428 = vunpack.c.l.bf16 %v417
        %v429 = vunpack.c.l.bf16 %v418
        %v430 = vunpack.c.h.bf16 %v418
        %v431 = vunpack.c.l.bf16 %v419
        %v432 = vsub.f32 %v400, %v420
        %v433 = vsub.f32 %v401, %v421
        %v434 = vsub.f32 %v402, %v422
        %v435 = vsub.f32 %v403, %v423
        %v436 = vsub.f32 %v404, %v424
        %v437 = vsub.f32 %v405, %v425
        %v438 = vsub.f32 %v406, %v426
        %v439 = vsub.f32 %v407, %v427
        %v440 = vsub.f32 %v408, %v428
        %v441 = vsub.f32 %v409, %v429
        %v442 = vsub.f32 %v410, %v430
        %v443 = vsub.f32 %v411, %v431
        %v444 = vpack.c.bf16 %v435, %v432
        %v445 = vpack.c.bf16 %v436, %v433
        %v446 = vpack.c.bf16 %v437, %v434
        %v447 = vpack.c.bf16 %v441, %v438
        %v448 = vpack.c.bf16 %v442, %v439
        %v449 = vpack.c.bf16 %v443, %v440
        %v498 = vunpack.c.l.b16 %v282
        %v499 = vunpack.c.l.b16 %v283
        %v500 = vunpack.c.l.b16 %v284
        %v501 = vunpack.c.l.b16 %v285
        %v502 = vunpack.c.l.b16 %v286
        %v503 = vunpack.c.l.b16 %v287
        %v504 = vunpack.c.l.b16 %v288
        %v505 = vunpack.c.l.b16 %v289
        %v506 = vunpack.c.l.b16 %v290
        %v507 = vunpack.c.l.b16 %v291
        %v508 = vunpack.c.l.b16 %v292
        %v509 = vunpack.c.l.b16 %v293
        %v510 = vunpack.c.l.b16 %v294
        %v511 = vunpack.c.l.b16 %v295
        %v512 = vunpack.c.l.b16 %v296
        %v513 = vunpack.c.l.b16 %v297
        %v514 = vunpack.c.l.b16 %v298
        %v515 = vunpack.c.l.b16 %v299
        %v516 = vunpack.c.l.b16 %v300
        %v517 = vunpack.c.l.b16 %v301
        %v518 = vunpack.c.l.b16 %v302
        %v519 = vunpack.c.l.b16 %v303
        %v520 = vunpack.c.l.b16 %v304
        %v521 = vunpack.c.l.b16 %v305
        %v522 = vunpack.c.l.b16 %v306
        %v523 = vunpack.c.l.b16 %v307
        %v524 = vunpack.c.l.b16 %v308
        %v525 = vunpack.c.l.b16 %v309
        %v526 = vunpack.c.l.b16 %v310
        %v527 = vunpack.c.l.b16 %v311
        %v528 = vunpack.c.l.b16 %v312
        %v529 = vunpack.c.l.b16 %v313
        %v530 = vunpack.c.l.b16 %v314
        %v531 = vunpack.c.l.b16 %v315
        %v532 = vunpack.c.l.b16 %v316
        %v533 = vunpack.c.l.b16 %v317
        %v534 = vunpack.c.l.b16 %v318
        %v535 = vunpack.c.l.b16 %v319
        %v536 = vunpack.c.l.b16 %v320
        %v537 = vunpack.c.l.b16 %v321
        %v538 = vunpack.c.l.b16 %v322
        %v539 = vunpack.c.l.b16 %v323
        %v540 = vunpack.c.l.b16 %v324
        %v541 = vunpack.c.l.b16 %v325
        %v542 = vunpack.c.l.b16 %v326
        %v543 = vunpack.c.l.b16 %v327
        %v544 = vunpack.c.l.b16 %v328
        %v545 = vunpack.c.l.b16 %v329
        %v546 = vpack.c.b16 %v499, %v498
        %v547 = vpack.c.b16 %v501, %v500
        %v548 = vpack.c.b16 %v503, %v502
        %v549 = vpack.c.b16 %v505, %v504
        %v550 = vpack.c.b16 %v507, %v506
        %v551 = vpack.c.b16 %v509, %v508
        %v552 = vpack.c.b16 %v511, %v510
        %v553 = vpack.c.b16 %v513, %v512
        %v554 = vpack.c.b16 %v515, %v514
        %v555 = vpack.c.b16 %v517, %v516
        %v556 = vpack.c.b16 %v519, %v518
        %v557 = vpack.c.b16 %v521, %v520
        %v558 = vpack.c.b16 %v523, %v522
        %v559 = vpack.c.b16 %v525, %v524
        %v560 = vpack.c.b16 %v527, %v526
        %v561 = vpack.c.b16 %v529, %v528
        %v562 = vpack.c.b16 %v531, %v530
        %v563 = vpack.c.b16 %v533, %v532
        %v564 = vpack.c.b16 %v535, %v534
        %v565 = vpack.c.b16 %v537, %v536
        %v566 = vpack.c.b16 %v539, %v538
        %v567 = vpack.c.b16 %v541, %v540
        %v568 = vpack.c.b16 %v543, %v542
        %v569 = vpack.c.b16 %v545, %v544
        %594 = vmatpush.bf16.msra.mxu0 %v553
        %595 = vmatpush.bf16.msra.mxu0 %v552
        %596 = vmatpush.bf16.msra.mxu0 %v551
        %597 = vmatpush.bf16.msra.mxu0 %v550
        %598 = vmatpush.bf16.msra.mxu0 %v549
        %599 = vmatpush.bf16.msra.mxu0 %v548
        %600 = vmatpush.bf16.msra.mxu0 %v547
        %601 = vmatpush.bf16.msra.mxu0 %v546
        %602 = vmatmul.bf16.gmra.mxu0 %v394
        %v603 = vpop.f32.mrf.mxu0
        %v604 = vadd.f32 0.0, %v603
        %v605 = vpop.f32.mrf.mxu0
        %v606 = vadd.f32 0.0, %v605
        %607 = vmatmul.bf16.gmra.mxu0 %v397
        %v608 = vpop.f32.mrf.mxu0
        %v609 = vadd.f32 0.0, %v608
        %v610 = vpop.f32.mrf.mxu0
        %v611 = vadd.f32 0.0, %v610
        %612 = vdwg.mxu0
        %613 = vmatpush.bf16.msra.mxu0 %v561
        %614 = vmatpush.bf16.msra.mxu0 %v560
        %615 = vmatpush.bf16.msra.mxu0 %v559
        %616 = vmatpush.bf16.msra.mxu0 %v558
        %617 = vmatpush.bf16.msra.mxu0 %v557
        %618 = vmatpush.bf16.msra.mxu0 %v556
        %619 = vmatpush.bf16.msra.mxu0 %v555
        %620 = vmatpush.bf16.msra.mxu0 %v554
        %621 = vmatmul.bf16.gmra.mxu0 %v395
        %v622 = vpop.f32.mrf.mxu0
        %v623 = vadd.f32 %v604, %v622
        %v624 = vpop.f32.mrf.mxu0
        %v625 = vadd.f32 %v606, %v624
        %626 = vmatmul.bf16.gmra.mxu0 %v398
        %v627 = vpop.f32.mrf.mxu0
        %v628 = vadd.f32 %v609, %v627
        %v629 = vpop.f32.mrf.mxu0
        %v630 = vadd.f32 %v611, %v629
        %631 = vdwg.mxu0
        %632 = vmatpush.bf16.msra.mxu0 %v569
        %633 = vmatpush.bf16.msra.mxu0 %v568
        %634 = vmatpush.bf16.msra.mxu0 %v567
        %635 = vmatpush.bf16.msra.mxu0 %v566
        %636 = vmatpush.bf16.msra.mxu0 %v565
        %637 = vmatpush.bf16.msra.mxu0 %v564
        %638 = vmatpush.bf16.msra.mxu0 %v563
        %639 = vmatpush.bf16.msra.mxu0 %v562
        %640 = vmatmul.bf16.gmra.mxu0 %v396
        %v641 = vpop.f32.mrf.mxu0
        %v642 = vadd.f32 %v623, %v641
        %v643 = vpop.f32.mrf.mxu0
        %v644 = vadd.f32 %v625, %v643
        %645 = vmatmul.bf16.gmra.mxu0 %v399
        %v646 = vpop.f32.mrf.mxu0
        %v647 = vadd.f32 %v628, %v646
        %v648 = vpop.f32.mrf.mxu0
        %v649 = vadd.f32 %v630, %v648
        %650 = vdwg.mxu0
        %v659 = vunpack.c.l.b16 %v362
        %v660 = vunpack.c.h.b16 %v362
        %v661 = vunpack.c.l.b16 %v363
        %v662 = vunpack.c.l.b16 %v364
        %v663 = vunpack.c.h.b16 %v364
        %v664 = vunpack.c.l.b16 %v365
        %v665 = vunpack.c.l.b16 %v366
        %v666 = vunpack.c.h.b16 %v366
        %v667 = vunpack.c.l.b16 %v367
        %v668 = vunpack.c.l.b16 %v368
        %v669 = vunpack.c.h.b16 %v368
        %v670 = vunpack.c.l.b16 %v369
        %v671 = vpack.c.b16 %v662, %v659
        %v672 = vpack.c.b16 %v663, %v660
        %v673 = vpack.c.b16 %v664, %v661
        %v674 = vpack.c.b16 %v668, %v665
        %v675 = vpack.c.b16 %v669, %v666
        %v676 = vpack.c.b16 %v670, %v667
        %683 = vmatpush.bf16.msra.mxu0 %v553
        %684 = vmatpush.bf16.msra.mxu0 %v552
        %685 = vmatpush.bf16.msra.mxu0 %v551
        %686 = vmatpush.bf16.msra.mxu0 %v550
        %687 = vmatpush.bf16.msra.mxu0 %v549
        %688 = vmatpush.bf16.msra.mxu0 %v548
        %689 = vmatpush.bf16.msra.mxu0 %v547
        %690 = vmatpush.bf16.msra.mxu0 %v546
        %691 = vmatmul.bf16.gmra.mxu0 %v671
        %v692 = vpop.f32.mrf.mxu0
        %v693 = vadd.f32 %v642, %v692
        %v694 = vpop.f32.mrf.mxu0
        %v695 = vadd.f32 %v644, %v694
        %696 = vmatmul.bf16.gmra.mxu0 %v674
        %v697 = vpop.f32.mrf.mxu0
        %v698 = vadd.f32 %v647, %v697
        %v699 = vpop.f32.mrf.mxu0
        %v700 = vadd.f32 %v649, %v699
        %701 = vdwg.mxu0
        %702 = vmatpush.bf16.msra.mxu0 %v561
        %703 = vmatpush.bf16.msra.mxu0 %v560
        %704 = vmatpush.bf16.msra.mxu0 %v559
        %705 = vmatpush.bf16.msra.mxu0 %v558
        %706 = vmatpush.bf16.msra.mxu0 %v557
        %707 = vmatpush.bf16.msra.mxu0 %v556
        %708 = vmatpush.bf16.msra.mxu0 %v555
        %709 = vmatpush.bf16.msra.mxu0 %v554
        %710 = vmatmul.bf16.gmra.mxu0 %v672
        %v711 = vpop.f32.mrf.mxu0
        %v712 = vadd.f32 %v693, %v711
        %v713 = vpop.f32.mrf.mxu0
        %v714 = vadd.f32 %v695, %v713
        %715 = vmatmul.bf16.gmra.mxu0 %v675
        %v716 = vpop.f32.mrf.mxu0
        %v717 = vadd.f32 %v698, %v716
        %v718 = vpop.f32.mrf.mxu0
        %v719 = vadd.f32 %v700, %v718
        %720 = vdwg.mxu0
        %721 = vmatpush.bf16.msra.mxu0 %v569
        %722 = vmatpush.bf16.msra.mxu0 %v568
        %723 = vmatpush.bf16.msra.mxu0 %v567
        %724 = vmatpush.bf16.msra.mxu0 %v566
        %725 = vmatpush.bf16.msra.mxu0 %v565
        %726 = vmatpush.bf16.msra.mxu0 %v564
        %727 = vmatpush.bf16.msra.mxu0 %v563
        %728 = vmatpush.bf16.msra.mxu0 %v562
        %729 = vmatmul.bf16.gmra.mxu0 %v673
        %v730 = vpop.f32.mrf.mxu0
        %v731 = vadd.f32 %v712, %v730
        %v732 = vpop.f32.mrf.mxu0
        %v733 = vadd.f32 %v714, %v732
        %734 = vmatmul.bf16.gmra.mxu0 %v676
        %v735 = vpop.f32.mrf.mxu0
        %v736 = vadd.f32 %v717, %v735
        %v737 = vpop.f32.mrf.mxu0
        %v738 = vadd.f32 %v719, %v737
        %739 = vdwg.mxu0
        %740 = vmatpush.bf16.msra.mxu0 %v553
        %741 = vmatpush.bf16.msra.mxu0 %v552
        %742 = vmatpush.bf16.msra.mxu0 %v551
        %743 = vmatpush.bf16.msra.mxu0 %v550
        %744 = vmatpush.bf16.msra.mxu0 %v549
        %745 = vmatpush.bf16.msra.mxu0 %v548
        %746 = vmatpush.bf16.msra.mxu0 %v547
        %747 = vmatpush.bf16.msra.mxu0 %v546
        %748 = vmatmul.bf16.gmra.mxu0 %v444
        %v749 = vpop.f32.mrf.mxu0
        %v750 = vadd.f32 0.0, %v749
        %v751 = vpop.f32.mrf.mxu0
        %v752 = vadd.f32 0.0, %v751
        %753 = vmatmul.bf16.gmra.mxu0 %v447
        %v754 = vpop.f32.mrf.mxu0
        %v755 = vadd.f32 0.0, %v754
        %v756 = vpop.f32.mrf.mxu0
        %v757 = vadd.f32 0.0, %v756
        %758 = vdwg.mxu0
        %759 = vmatpush.bf16.msra.mxu0 %v561
        %760 = vmatpush.bf16.msra.mxu0 %v560
        %761 = vmatpush.bf16.msra.mxu0 %v559
        %762 = vmatpush.bf16.msra.mxu0 %v558
        %763 = vmatpush.bf16.msra.mxu0 %v557
        %764 = vmatpush.bf16.msra.mxu0 %v556
        %765 = vmatpush.bf16.msra.mxu0 %v555
        %766 = vmatpush.bf16.msra.mxu0 %v554
        %767 = vmatmul.bf16.gmra.mxu0 %v445
        %v768 = vpop.f32.mrf.mxu0
        %v769 = vadd.f32 %v750, %v768
        %v770 = vpop.f32.mrf.mxu0
        %v771 = vadd.f32 %v752, %v770
        %772 = vmatmul.bf16.gmra.mxu0 %v448
        %v773 = vpop.f32.mrf.mxu0
        %v774 = vadd.f32 %v755, %v773
        %v775 = vpop.f32.mrf.mxu0
        %v776 = vadd.f32 %v757, %v775
        %777 = vdwg.mxu0
        %778 = vmatpush.bf16.msra.mxu0 %v569
        %779 = vmatpush.bf16.msra.mxu0 %v568
        %780 = vmatpush.bf16.msra.mxu0 %v567
        %781 = vmatpush.bf16.msra.mxu0 %v566
        %782 = vmatpush.bf16.msra.mxu0 %v565
        %783 = vmatpush.bf16.msra.mxu0 %v564
        %784 = vmatpush.bf16.msra.mxu0 %v563
        %785 = vmatpush.bf16.msra.mxu0 %v562
        %786 = vmatmul.bf16.gmra.mxu0 %v446
        %v787 = vpop.f32.mrf.mxu0
        %v788 = vadd.f32 %v769, %v787
        %v789 = vpop.f32.mrf.mxu0
        %v790 = vadd.f32 %v771, %v789
        %791 = vmatmul.bf16.gmra.mxu0 %v449
        %v792 = vpop.f32.mrf.mxu0
        %v793 = vadd.f32 %v774, %v792
        %v794 = vpop.f32.mrf.mxu0
        %v795 = vadd.f32 %v776, %v794
        %796 = vdwg.mxu0
        %v805 = vunpack.c.l.b16 %v412
        %v806 = vunpack.c.h.b16 %v412
        %v807 = vunpack.c.l.b16 %v413
        %v808 = vunpack.c.l.b16 %v414
        %v809 = vunpack.c.h.b16 %v414
        %v810 = vunpack.c.l.b16 %v415
        %v811 = vunpack.c.l.b16 %v416
        %v812 = vunpack.c.h.b16 %v416
        %v813 = vunpack.c.l.b16 %v417
        %v814 = vunpack.c.l.b16 %v418
        %v815 = vunpack.c.h.b16 %v418
        %v816 = vunpack.c.l.b16 %v419
        %v817 = vpack.c.b16 %v808, %v805
        %v818 = vpack.c.b16 %v809, %v806
        %v819 = vpack.c.b16 %v810, %v807
        %v820 = vpack.c.b16 %v814, %v811
        %v821 = vpack.c.b16 %v815, %v812
        %v822 = vpack.c.b16 %v816, %v813
        %829 = vmatpush.bf16.msra.mxu0 %v553
        %830 = vmatpush.bf16.msra.mxu0 %v552
        %831 = vmatpush.bf16.msra.mxu0 %v551
        %832 = vmatpush.bf16.msra.mxu0 %v550
        %833 = vmatpush.bf16.msra.mxu0 %v549
        %834 = vmatpush.bf16.msra.mxu0 %v548
        %835 = vmatpush.bf16.msra.mxu0 %v547
        %836 = vmatpush.bf16.msra.mxu0 %v546
        %837 = vmatmul.bf16.gmra.mxu0 %v817
        %v838 = vpop.f32.mrf.mxu0
        %v839 = vadd.f32 %v788, %v838
        %v840 = vpop.f32.mrf.mxu0
        %v841 = vadd.f32 %v790, %v840
        %842 = vmatmul.bf16.gmra.mxu0 %v820
        %v843 = vpop.f32.mrf.mxu0
        %v844 = vadd.f32 %v793, %v843
        %v845 = vpop.f32.mrf.mxu0
        %v846 = vadd.f32 %v795, %v845
        %847 = vdwg.mxu0
        %848 = vmatpush.bf16.msra.mxu0 %v561
        %849 = vmatpush.bf16.msra.mxu0 %v560
        %850 = vmatpush.bf16.msra.mxu0 %v559
        %851 = vmatpush.bf16.msra.mxu0 %v558
        %852 = vmatpush.bf16.msra.mxu0 %v557
        %853 = vmatpush.bf16.msra.mxu0 %v556
        %854 = vmatpush.bf16.msra.mxu0 %v555
        %855 = vmatpush.bf16.msra.mxu0 %v554
        %856 = vmatmul.bf16.gmra.mxu0 %v818
        %v857 = vpop.f32.mrf.mxu0
        %v858 = vadd.f32 %v839, %v857
        %v859 = vpop.f32.mrf.mxu0
        %v860 = vadd.f32 %v841, %v859
        %861 = vmatmul.bf16.gmra.mxu0 %v821
        %v862 = vpop.f32.mrf.mxu0
        %v863 = vadd.f32 %v844, %v862
        %v864 = vpop.f32.mrf.mxu0
        %v865 = vadd.f32 %v846, %v864
        %866 = vdwg.mxu0
        %867 = vmatpush.bf16.msra.mxu0 %v569
        %868 = vmatpush.bf16.msra.mxu0 %v568
        %869 = vmatpush.bf16.msra.mxu0 %v567
        %870 = vmatpush.bf16.msra.mxu0 %v566
        %871 = vmatpush.bf16.msra.mxu0 %v565
        %872 = vmatpush.bf16.msra.mxu0 %v564
        %873 = vmatpush.bf16.msra.mxu0 %v563
        %874 = vmatpush.bf16.msra.mxu0 %v562
        %875 = vmatmul.bf16.gmra.mxu0 %v819
        %v876 = vpop.f32.mrf.mxu0
        %v877 = vadd.f32 %v858, %v876
        %v878 = vpop.f32.mrf.mxu0
        %v879 = vadd.f32 %v860, %v878
        %880 = vmatmul.bf16.gmra.mxu0 %v822
        %v881 = vpop.f32.mrf.mxu0
        %v882 = vadd.f32 %v863, %v881
        %v883 = vpop.f32.mrf.mxu0
        %v884 = vadd.f32 %v865, %v883
        %885 = vdwg.mxu0
        %v886 = vmul.f32 %v731, 0.020833334
        %v887 = vmul.f32 %v733, 0.020833334
        %v888 = vmul.f32 %v736, 0.020833334
        %v889 = vmul.f32 %v738, 0.020833334
        %v890 = vmul.f32 %v877, 0.020833334
        %v891 = vmul.f32 %v879, 0.020833334
        %v892 = vmul.f32 %v882, 0.020833334
        %v893 = vmul.f32 %v884, 0.020833334
        %v894 = vmul.f32 %v886, %v886
        %v895 = vmul.f32 %v887, %v887
        %v896 = vmul.f32 %v888, %v888
        %v897 = vmul.f32 %v889, %v889
        %v898 = vsub.f32 %v890, %v894
        %v899 = vsub.f32 %v891, %v895
        %v900 = vsub.f32 %v892, %v896
        %v901 = vsub.f32 %v893, %v897
        %v902 = vadd.f32 %v898, 1e-05
        %v903 = vadd.f32 %v899, 1e-05
        %v904 = vadd.f32 %v900, 1e-05
        %v905 = vadd.f32 %v901, 1e-05
        %v906 = vrsqrt.pop %v902
        %v907 = vmul.f32 %v906, %v902
        %v908 = vmul.f32 %v907, %v906
        %v909 = vmul.f32 0.5, %v908
        %v910 = vsub.f32 1.5, %v909
        %v911 = vmul.f32 %v906, %v910
        %vm912 = vweird.f32 %v902
        %vm913 = vweird.f32 %v906
        %vm914 = vmor %vm912, %vm913
        %v915 = vsel %vm914, %v906, %v911
        %v916 = vrsqrt.pop %v903
        %v917 = vmul.f32 %v916, %v903
        %v918 = vmul.f32 %v917, %v916
        %v919 = vmul.f32 0.5, %v918
        %v920 = vsub.f32 1.5, %v919
        %v921 = vmul.f32 %v916, %v920
        %vm922 = vweird.f32 %v903
        %vm923 = vweird.f32 %v916
        %vm924 = vmor %vm922, %vm923
        %v925 = vsel %vm924, %v916, %v921
        %v926 = vrsqrt.pop %v904
        %v927 = vmul.f32 %v926, %v904
        %v928 = vmul.f32 %v927, %v926
        %v929 = vmul.f32 0.5, %v928
        %v930 = vsub.f32 1.5, %v929
        %v931 = vmul.f32 %v926, %v930
        %vm932 = vweird.f32 %v904
        %vm933 = vweird.f32 %v926
        %vm934 = vmor %vm932, %vm933
        %v935 = vsel %vm934, %v926, %v931
        %v936 = vrsqrt.pop %v905
        %v937 = vmul.f32 %v936, %v905
        %v938 = vmul.f32 %v937, %v936
        %v939 = vmul.f32 0.5, %v938
        %v940 = vsub.f32 1.5, %v939
        %v941 = vmul.f32 %v936, %v940
        %vm942 = vweird.f32 %v905
        %vm943 = vweird.f32 %v936
        %vm944 = vmor %vm942, %vm943
        %v945 = vsel %vm944, %v936, %v941
        %v946 = vpack.c.bf16 %v915, %v915
        %v947 = vpack.c.bf16 %v925, %v925
        %v948 = vpack.c.bf16 %v935, %v935
        %v949 = vpack.c.bf16 %v945, %v945
        %v950 = vunpack.c.l.bf16 %v946
        %v951 = vunpack.c.l.bf16 %v947
        %v952 = vunpack.c.l.bf16 %v948
        %v953 = vunpack.c.l.bf16 %v949
        %v954 = vsub.f32 %v915, %v950
        %v955 = vsub.f32 %v925, %v951
        %v956 = vsub.f32 %v935, %v952
        %v957 = vsub.f32 %v945, %v953
        %v958 = vpack.c.bf16 %v955, %v954
        %v959 = vpack.c.bf16 %v957, %v956
        %v992 = vunpack.c.l.b16 %v330
        %v993 = vunpack.c.h.b16 %v330
        %v994 = vunpack.c.l.b16 %v331
        %v995 = vunpack.c.l.b16 %v332
        %v996 = vunpack.c.h.b16 %v332
        %v997 = vunpack.c.l.b16 %v333
        %v998 = vunpack.c.l.b16 %v334
        %v999 = vunpack.c.h.b16 %v334
        %v1000 = vunpack.c.l.b16 %v335
        %v1001 = vunpack.c.l.b16 %v336
        %v1002 = vunpack.c.h.b16 %v336
        %v1003 = vunpack.c.l.b16 %v337
        %v1004 = vunpack.c.l.b16 %v338
        %v1005 = vunpack.c.h.b16 %v338
        %v1006 = vunpack.c.l.b16 %v339
        %v1007 = vunpack.c.l.b16 %v340
        %v1008 = vunpack.c.h.b16 %v340
        %v1009 = vunpack.c.l.b16 %v341
        %v1010 = vunpack.c.l.b16 %v342
        %v1011 = vunpack.c.h.b16 %v342
        %v1012 = vunpack.c.l.b16 %v343
        %v1013 = vunpack.c.l.b16 %v344
        %v1014 = vunpack.c.h.b16 %v344
        %v1015 = vunpack.c.l.b16 %v345
        %v1016 = vunpack.c.l.b16 %v346
        %v1017 = vunpack.c.h.b16 %v346
        %v1018 = vunpack.c.l.b16 %v347
        %v1019 = vunpack.c.l.b16 %v348
        %v1020 = vunpack.c.h.b16 %v348
        %v1021 = vunpack.c.l.b16 %v349
        %v1022 = vunpack.c.l.b16 %v350
        %v1023 = vunpack.c.h.b16 %v350
        %v1024 = vunpack.c.l.b16 %v351
        %v1025 = vunpack.c.l.b16 %v352
        %v1026 = vunpack.c.h.b16 %v352
        %v1027 = vunpack.c.l.b16 %v353
        %v1028 = vunpack.c.l.b16 %v354
        %v1029 = vunpack.c.h.b16 %v354
        %v1030 = vunpack.c.l.b16 %v355
        %v1031 = vunpack.c.l.b16 %v356
        %v1032 = vunpack.c.h.b16 %v356
        %v1033 = vunpack.c.l.b16 %v357
        %v1034 = vunpack.c.l.b16 %v358
        %v1035 = vunpack.c.h.b16 %v358
        %v1036 = vunpack.c.l.b16 %v359
        %v1037 = vunpack.c.l.b16 %v360
        %v1038 = vunpack.c.h.b16 %v360
        %v1039 = vunpack.c.l.b16 %v361
        %v1040 = vpack.c.b16 %v995, %v992
        %v1041 = vpack.c.b16 %v996, %v993
        %v1042 = vpack.c.b16 %v997, %v994
        %v1043 = vpack.c.b16 %v1001, %v998
        %v1044 = vpack.c.b16 %v1002, %v999
        %v1045 = vpack.c.b16 %v1003, %v1000
        %v1046 = vpack.c.b16 %v1007, %v1004
        %v1047 = vpack.c.b16 %v1008, %v1005
        %v1048 = vpack.c.b16 %v1009, %v1006
        %v1049 = vpack.c.b16 %v1013, %v1010
        %v1050 = vpack.c.b16 %v1014, %v1011
        %v1051 = vpack.c.b16 %v1015, %v1012
        %v1052 = vpack.c.b16 %v1019, %v1016
        %v1053 = vpack.c.b16 %v1020, %v1017
        %v1054 = vpack.c.b16 %v1021, %v1018
        %v1055 = vpack.c.b16 %v1025, %v1022
        %v1056 = vpack.c.b16 %v1026, %v1023
        %v1057 = vpack.c.b16 %v1027, %v1024
        %v1058 = vpack.c.b16 %v1031, %v1028
        %v1059 = vpack.c.b16 %v1032, %v1029
        %v1060 = vpack.c.b16 %v1033, %v1030
        %v1061 = vpack.c.b16 %v1037, %v1034
        %v1062 = vpack.c.b16 %v1038, %v1035
        %v1063 = vpack.c.b16 %v1039, %v1036
        %1088 = vmatpush.bf16.msra.mxu0 %v1061
        %1089 = vmatpush.bf16.msra.mxu0 %v1058
        %1090 = vmatpush.bf16.msra.mxu0 %v1055
        %1091 = vmatpush.bf16.msra.mxu0 %v1052
        %1092 = vmatpush.bf16.msra.mxu0 %v1049
        %1093 = vmatpush.bf16.msra.mxu0 %v1046
        %1094 = vmatpush.bf16.msra.mxu0 %v1043
        %1095 = vmatpush.bf16.msra.mxu0 %v1040
        %1096 = vmatmul.bf16.gmra.mxu0 %v958
        %v1097 = vpop.f32.mrf.mxu0
        %v1098 = vadd.f32 0.0, %v1097
        %v1099 = vpop.f32.mrf.mxu0
        %v1100 = vadd.f32 0.0, %v1099
        %1101 = vmatmul.bf16.gmra.mxu0 %v959
        %v1102 = vpop.f32.mrf.mxu0
        %v1103 = vadd.f32 0.0, %v1102
        %v1104 = vpop.f32.mrf.mxu0
        %v1105 = vadd.f32 0.0, %v1104
        %1106 = vdwg.mxu0
        %1107 = vmatpush.bf16.msra.mxu0 %v1062
        %1108 = vmatpush.bf16.msra.mxu0 %v1059
        %1109 = vmatpush.bf16.msra.mxu0 %v1056
        %1110 = vmatpush.bf16.msra.mxu0 %v1053
        %1111 = vmatpush.bf16.msra.mxu0 %v1050
        %1112 = vmatpush.bf16.msra.mxu0 %v1047
        %1113 = vmatpush.bf16.msra.mxu0 %v1044
        %1114 = vmatpush.bf16.msra.mxu0 %v1041
        %1115 = vmatmul.bf16.gmra.mxu0 %v958
        %v1116 = vpop.f32.mrf.mxu0
        %v1117 = vadd.f32 0.0, %v1116
        %v1118 = vpop.f32.mrf.mxu0
        %v1119 = vadd.f32 0.0, %v1118
        %1120 = vmatmul.bf16.gmra.mxu0 %v959
        %v1121 = vpop.f32.mrf.mxu0
        %v1122 = vadd.f32 0.0, %v1121
        %v1123 = vpop.f32.mrf.mxu0
        %v1124 = vadd.f32 0.0, %v1123
        %1125 = vdwg.mxu0
        %1126 = vmatpush.bf16.msra.mxu0 %v1063
        %1127 = vmatpush.bf16.msra.mxu0 %v1060
        %1128 = vmatpush.bf16.msra.mxu0 %v1057
        %1129 = vmatpush.bf16.msra.mxu0 %v1054
        %1130 = vmatpush.bf16.msra.mxu0 %v1051
        %1131 = vmatpush.bf16.msra.mxu0 %v1048
        %1132 = vmatpush.bf16.msra.mxu0 %v1045
        %1133 = vmatpush.bf16.msra.mxu0 %v1042
        %1134 = vmatmul.bf16.gmra.mxu0 %v958
        %v1135 = vpop.f32.mrf.mxu0
        %v1136 = vadd.f32 0.0, %v1135
        %v1137 = vpop.f32.mrf.mxu0
        %v1138 = vadd.f32 0.0, %v1137
        %1139 = vmatmul.bf16.gmra.mxu0 %v959
        %v1140 = vpop.f32.mrf.mxu0
        %v1141 = vadd.f32 0.0, %v1140
        %v1142 = vpop.f32.mrf.mxu0
        %v1143 = vadd.f32 0.0, %v1142
        %1144 = vdwg.mxu0
        %v1149 = vunpack.c.l.b16 %v946
        %v1150 = vunpack.c.l.b16 %v947
        %v1151 = vunpack.c.l.b16 %v948
        %v1152 = vunpack.c.l.b16 %v949
        %v1153 = vpack.c.b16 %v1150, %v1149
        %v1154 = vpack.c.b16 %v1152, %v1151
        %1157 = vmatpush.bf16.msra.mxu0 %v1061
        %1158 = vmatpush.bf16.msra.mxu0 %v1058
        %1159 = vmatpush.bf16.msra.mxu0 %v1055
        %1160 = vmatpush.bf16.msra.mxu0 %v1052
        %1161 = vmatpush.bf16.msra.mxu0 %v1049
        %1162 = vmatpush.bf16.msra.mxu0 %v1046
        %1163 = vmatpush.bf16.msra.mxu0 %v1043
        %1164 = vmatpush.bf16.msra.mxu0 %v1040
        %1165 = vmatmul.bf16.gmra.mxu0 %v1153
        %v1166 = vpop.f32.mrf.mxu0
        %v1167 = vadd.f32 %v1098, %v1166
        %v1168 = vpop.f32.mrf.mxu0
        %v1169 = vadd.f32 %v1100, %v1168
        %1170 = vmatmul.bf16.gmra.mxu0 %v1154
        %v1171 = vpop.f32.mrf.mxu0
        %v1172 = vadd.f32 %v1103, %v1171
        %v1173 = vpop.f32.mrf.mxu0
        %v1174 = vadd.f32 %v1105, %v1173
        %1175 = vdwg.mxu0
        %1176 = vmatpush.bf16.msra.mxu0 %v1062
        %1177 = vmatpush.bf16.msra.mxu0 %v1059
        %1178 = vmatpush.bf16.msra.mxu0 %v1056
        %1179 = vmatpush.bf16.msra.mxu0 %v1053
        %1180 = vmatpush.bf16.msra.mxu0 %v1050
        %1181 = vmatpush.bf16.msra.mxu0 %v1047
        %1182 = vmatpush.bf16.msra.mxu0 %v1044
        %1183 = vmatpush.bf16.msra.mxu0 %v1041
        %1184 = vmatmul.bf16.gmra.mxu0 %v1153
        %v1185 = vpop.f32.mrf.mxu0
        %v1186 = vadd.f32 %v1117, %v1185
        %v1187 = vpop.f32.mrf.mxu0
        %v1188 = vadd.f32 %v1119, %v1187
        %1189 = vmatmul.bf16.gmra.mxu0 %v1154
        %v1190 = vpop.f32.mrf.mxu0
        %v1191 = vadd.f32 %v1122, %v1190
        %v1192 = vpop.f32.mrf.mxu0
        %v1193 = vadd.f32 %v1124, %v1192
        %1194 = vdwg.mxu0
        %1195 = vmatpush.bf16.msra.mxu0 %v1063
        %1196 = vmatpush.bf16.msra.mxu0 %v1060
        %1197 = vmatpush.bf16.msra.mxu0 %v1057
        %1198 = vmatpush.bf16.msra.mxu0 %v1054
        %1199 = vmatpush.bf16.msra.mxu0 %v1051
        %1200 = vmatpush.bf16.msra.mxu0 %v1048
        %1201 = vmatpush.bf16.msra.mxu0 %v1045
        %1202 = vmatpush.bf16.msra.mxu0 %v1042
        %1203 = vmatmul.bf16.gmra.mxu0 %v1153
        %v1204 = vpop.f32.mrf.mxu0
        %v1205 = vadd.f32 %v1136, %v1204
        %v1206 = vpop.f32.mrf.mxu0
        %v1207 = vadd.f32 %v1138, %v1206
        %1208 = vmatmul.bf16.gmra.mxu0 %v1154
        %v1209 = vpop.f32.mrf.mxu0
        %v1210 = vadd.f32 %v1141, %v1209
        %v1211 = vpop.f32.mrf.mxu0
        %v1212 = vadd.f32 %v1143, %v1211
        %1213 = vdwg.mxu0
        %v1214 = vmul.f32 %v269, %v1167
        %v1215 = vmul.f32 %v270, %v1186
        %v1216 = vmul.f32 %v271, %v1205
        %v1217 = vmul.f32 %v272, %v1169
        %v1218 = vmul.f32 %v273, %v1188
        %v1219 = vmul.f32 %v274, %v1207
        %v1220 = vmul.f32 %v275, %v1172
        %v1221 = vmul.f32 %v276, %v1191
        %v1222 = vmul.f32 %v277, %v1210
        %v1223 = vmul.f32 %v278, %v1174
        %v1224 = vmul.f32 %v279, %v1193
        %v1225 = vmul.f32 %v280, %v1212
        %v1227 = vperm.slane %v281, 0
        %v1228 = vperm.slane %v281, 1
        %v1229 = vperm.slane %v281, 2
        %v1233 = vmul.f32 %v1214, %v1227
        %v1234 = vmul.f32 %v1215, %v1228
        %v1235 = vmul.f32 %v1216, %v1229
        %v1236 = vmul.f32 %v1217, %v1227
        %v1237 = vmul.f32 %v1218, %v1228
        %v1238 = vmul.f32 %v1219, %v1229
        %v1239 = vmul.f32 %v1220, %v1227
        %v1240 = vmul.f32 %v1221, %v1228
        %v1241 = vmul.f32 %v1222, %v1229
        %v1242 = vmul.f32 %v1223, %v1227
        %v1243 = vmul.f32 %v1224, %v1228
        %v1244 = vmul.f32 %v1225, %v1229
        %1245 = vst [vmem:[%s266] sm:$0xff] %v1233
        %1246 = vst [vmem:[%s266 + $0x8] sm:$0xff] %v1234
        %1247 = vst [vmem:[%s266 + $0x10] sm:$0xff] %v1235
        %1248 = vst [vmem:[%s266 + $0x18] sm:$0xff] %v1236
        %1249 = vst [vmem:[%s266 + $0x20] sm:$0xff] %v1237
        %1250 = vst [vmem:[%s266 + $0x28] sm:$0xff] %v1238
        %1251 = vst [vmem:[%s266 + $0x30] sm:$0xff] %v1239
        %1252 = vst [vmem:[%s266 + $0x38] sm:$0xff] %v1240
        %1253 = vst [vmem:[%s266 + $0x40] sm:$0xff] %v1241
        %1254 = vst [vmem:[%s266 + $0x48] sm:$0xff] %v1242
        %1255 = vst [vmem:[%s266 + $0x50] sm:$0xff] %v1243
        %1256 = vst [vmem:[%s266 + $0x58] sm:$0xff] %v1244
        %s1257 = sand.u32 %s120, 1
        %s1258 = scalar_lea.sflag [#allocation4], %s1257
        %s1259 = sand.u32 %s120, 1
        %s1260 = smul.addr %s1259, 96
        %s1261 = scalar_lea.vmem [#allocation10], %s1260
        // Predicated region
        $region53: #{tpu_custom_call.1} parent=35 // pred_check
          %p1262 = pneg %p130
        $region54: #{tpu_custom_call.1} parent=35 // pred_check_branch
          %1264 = sbr.rel (%p1262) target = $region56
        $region55: #{tpu_custom_call.1} parent=35 // pred_region
          %s1265 = smul.u32 4, %s23
          %1267 = vsyncadd %s1258, 0
          %s1268 = smul.addr %s1265, 3
          %s1269 = smul.addr %s1268, 8
          %s1270 = scalar_lea.hbm %s4, %s1269
          %s1271 = sshll.u32 %s1261, 4
          %s1272 = int_to_ptr.vmem [resolvable:$true] %s1271
          %s1273 = sshll.u32 %s1270, 4
          %s1274 = int_to_ptr.hbm [resolvable:$true] %s1273
          %1279 = dma.vmem_to_hbm [thread:$0]  %s1272, 1536, %s1274, %s1258, 384, 384, 24
        $region56: #{tpu_custom_call.1} parent=35 // pred_fallthru
          _
      $region36: #{tpu_custom_call.1} parent=5 // pred_fallthru
        _
      %p1280 = scmp.le.s32.totalorder 2, %s18
      // Predicated region
      $region57: #{tpu_custom_call.1} parent=5 // pred_check
        %p1281 = pneg %p1280
      $region58: #{tpu_custom_call.1} parent=5 // pred_check_branch
        %1283 = sbr.rel (%p1281) target = $region60
      $region59: #{tpu_custom_call.1} parent=5 // pred_region
        %s1284 = ssub.s32 %s18, 2
        // Predicated region
        $region61: #{tpu_custom_call.1} parent=59 // pred_check
          %p1285 = pneg %p136
        $region62: #{tpu_custom_call.1} parent=59 // pred_check_branch
          %1287 = sbr.rel (%p1285) target = $region64
        $region63: #{tpu_custom_call.1} parent=59 // pred_region
          %s1288 = sand.u32 %s121, 1
          %s1289 = scalar_lea.sflag [#allocation4], %s1288
          %s1290 = sand.u32 %s121, 1
          %s1291 = smul.addr %s1290, 96
          %s1292 = scalar_lea.vmem [#allocation10], %s1291
          %1294 = dma.done %s1289, 1536
        $region64: #{tpu_custom_call.1} parent=59 // pred_fallthru
          _
      $region60: #{tpu_custom_call.1} parent=5 // pred_fallthru
        _
    $region6: #{tpu_custom_call.1} parent=1 // loop_footer
      %s22 = sadd.s32 1, %s18
    $region7: #{tpu_custom_call.1} parent=1 // loop_footer_branch
      %17 = sbr.rel target = $region3
    $region8: #{tpu_custom_call.1} parent=1 // loop_exit
      _
    %1295 = vsyncpa [#allocation3], 1
    %s1296 = scalar_lea.sflag [#allocation3], 1
    %1297 = vsyncpa %s1296, 1
    %1298 = vsyncpa [#allocation6], 1
    %1299 = vsyncpa [#allocation9], 1
    %1300 = vsyncpa [#allocation4], 1
    %s1301 = scalar_lea.sflag [#allocation4], 1
    %1302 = vsyncpa %s1301, 1

</llo_original>
